<compile_context>
chip_gen: v5e
topology: v5e:2x2
jax: 0.10.0
libtpu: 0.0.40
codegen_flags: <defaults>
</compile_context>

<pallas_src>
import functools

import jax
import jax.numpy as jnp
from jax.experimental import pallas as pl
from jax.experimental.pallas import tpu as pltpu


# In-kernel f32 temporaries per element (x upcast + exp(x - m) + slack for the
# shifted intermediate).  Counted by the tile picker and the VMEM limit so the
# declared footprint matches what Mosaic actually needs.
_TEMP_BYTES_PER_ELT = 12


def _sublane_align(dtype) -> int:
    """Rows per packed vreg for this dtype: f32 -> 8, bf16 -> 16, int8/fp8 -> 32."""
    return max(8, 32 // jnp.dtype(dtype).itemsize)


def _vmem_capacity_bytes() -> int:
    try:
        return int(pltpu.get_tpu_info().vmem_capacity_bytes)
    except Exception:
        return 64 * 1024 * 1024  # conservative fallback: v7x has 64 MiB / TensorCore


def _num_tensorcores() -> int:
    """2 on megacore / v7x parts where the 'parallel' grid axis shards across TCs."""
    try:
        kind = jax.devices()[0].device_kind.lower()
    except Exception:
        return 1
    if "v7" in kind or "v4" in kind or "v5p" in kind:
        return 2
    return 1


def _normalized_probs_kernel(logits_ref, out_ref, *, log_probs: bool,
                             approx_recip: bool):
    # One (TM, V) tile; vocab lives on lanes and is fully reduced per row.
    # NOTE: the last (ragged) row block may read padded rows; exp() of that
    # garbage can be inf/NaN but rows never mix and the boundary store is
    # masked, so results are unaffected.  Keep every op row-local here.
    x = logits_ref[...].astype(jnp.float32)            # f32 compute (PyTorch parity)
    m = jnp.max(x, axis=-1, keepdims=True)             # XLU row max
    shifted = x - m
    e = jnp.exp(shifted)                               # EUP
    denom = jnp.sum(e, axis=-1, keepdims=True)
    if log_probs:
        out_ref[...] = (shifted - jnp.log(denom)).astype(out_ref.dtype)
    else:
        inv = pl.reciprocal(denom, approx=approx_recip)  # EUP vrcp if approx
        out_ref[...] = (e * inv).astype(out_ref.dtype)


def _even_block_count_tile(rows: int, row_tile: int, align: int) -> int:
    """Nudge row_tile so the grid length is even (megacore balance on 2-TC parts)."""
    nb = pl.cdiv(rows, row_tile)
    if nb % 2 == 0:
        return row_tile
    for nb2 in (nb + 1, nb + 3):
        tm = -(-rows // nb2)                 # ceil(rows / nb2)
        tm = -(-tm // align) * align         # round up to sublane alignment
        if align <= tm < rows and pl.cdiv(rows, tm) % 2 == 0:
            return tm
    return row_tile


def _pick_row_tile(rows: int, V: int, in_bytes: int, out_bytes: int,
                   align: int) -> int:
    """Largest sublane-aligned row tile whose full VMEM footprint fits the budget."""
    capacity = _vmem_capacity_bytes()
    # ~72% of VMEM for: double-buffered in+out blocks + in-kernel f32 temps.
    # 64 MiB/TC (v7x)  -> ~46 MiB;  128 MiB (v5e/v6e) -> ~92 MiB.
    budget = min(int(capacity * 0.72), capacity - (12 << 20))
    per_row = V * (2 * (in_bytes + out_bytes) + _TEMP_BYTES_PER_ELT)
    tm = max(align, (budget // per_row) // align * align)
    if tm >= rows:
        tm = rows
        # Whole problem fits in one block.  Split only on 2-TensorCore parts so
        # the "parallel" row axis can shard; on single-TC chips a split is pure
        # ~0.35us/step overhead.
        if _num_tensorcores() > 1 and rows >= 2 * align:
            half = -(-((rows + 1) // 2) // align) * align
            if half < rows:
                tm = half
        return tm
    if _num_tensorcores() > 1:
        tm = _even_block_count_tile(rows, tm, align)
    return tm


def get_normalized_probs(logits, log_probs: bool, *,
                         out_dtype=jnp.float32,
                         row_tile: int | None = None,
                         approx_reciprocal: bool = False):
    """Pallas equivalent of FairseqDecoder.get_normalized_probs.

    logits: (..., V) array (any float dtype). Returns `out_dtype` (default
    float32, matching PyTorch) array of the same shape with softmax
    (log_probs=False) or log_softmax (log_probs=True) over the last axis.
    `approx_reciprocal=True` opts in to the EUP approximate reciprocal
    (~1e-3 relative error on the softmax path; log path unaffected).
    """
    orig_shape = logits.shape
    V = orig_shape[-1]
    rows = 1
    for d in orig_shape[:-1]:
        rows *= d
    x2d = logits.reshape(rows, V)

    in_bytes = jnp.dtype(logits.dtype).itemsize
    out_bytes = jnp.dtype(out_dtype).itemsize
    align = _sublane_align(logits.dtype)

    if row_tile is None:
        row_tile = _pick_row_tile(rows, V, in_bytes, out_bytes, align)
    else:
        row_tile = max(1, min(int(row_tile), rows))
        if row_tile < rows:
            # Keep user tiles sublane-dense for the input dtype's packing.
            row_tile = max(align, (row_tile // align) * align)
            row_tile = min(row_tile, rows)

    grid = (pl.cdiv(rows, row_tile),)

    # VMEM limit from the same accounting (I/O double-buffer + f32 temps).
    capacity = _vmem_capacity_bytes()
    needed = (2 * row_tile * V * (in_bytes + out_bytes)
              + row_tile * V * _TEMP_BYTES_PER_ELT + (2 << 20))
    vmem_limit = max(16 << 20, min(int(needed), capacity - (8 << 20)))

    # TODO(synk): for vocabularies where even one (align, V) block plus its f32
    # temporaries no longer fits VMEM (V >> ~150K on v7x), a V-tiled two-pass /
    # online-softmax variant is required; not implemented here.
    kernel = functools.partial(_normalized_probs_kernel, log_probs=log_probs,
                               approx_recip=approx_reciprocal)
    out = pl.pallas_call(
        kernel,
        out_shape=jax.ShapeDtypeStruct((rows, V), out_dtype),
        grid_spec=pltpu.PrefetchScalarGridSpec(
            num_scalar_prefetch=0,
            grid=grid,
            in_specs=[pl.BlockSpec((row_tile, V), lambda i: (i, 0))],
            out_specs=pl.BlockSpec((row_tile, V), lambda i: (i, 0)),
        ),
        compiler_params=pltpu.CompilerParams(
            dimension_semantics=("parallel",),
            vmem_limit_bytes=vmem_limit),
    )(x2d)

    return out.reshape(orig_shape)   # metadata-only reshape, no extra HBM pass


class FairseqDecoderPallas:
    """JAX/Pallas mirror of fairseq.models.FairseqDecoder (base class)."""

    def __init__(self, dictionary=None):
        self.dictionary = dictionary
        self.adaptive_softmax = None  # base class has none

    def forward(self, prev_output_tokens, encoder_out):
        raise NotImplementedError  # abstract in the reference module

    def get_normalized_probs(self, net_output, log_probs, sample=None, *,
                             out_dtype=jnp.float32):
        # TODO(synk): adaptive_softmax branch not implemented (the base class
        # never defines one); falls through to the logits path as in PyTorch.
        logits = net_output[0]
        return get_normalized_probs(logits, log_probs, out_dtype=out_dtype)

    def max_positions(self):
        raise NotImplementedError

    def upgrade_state_dict(self, state_dict):
        return state_dict


if __name__ == "__main__":
    key = jax.random.PRNGKey(0)
    B, T, V = 2, 8, 128  # batch, seq, vocab (vocab lane-aligned)
    logits = jax.random.normal(key, (B, T, V), dtype=jnp.bfloat16)

    decoder = FairseqDecoderPallas(dictionary=None)

    # Default path: exact reciprocal, f32 output (PyTorch parity).
    probs = decoder.get_normalized_probs((logits, None), log_probs=False)
    logp = decoder.get_normalized_probs((logits, None), log_probs=True)
    jax.block_until_ready(probs)
    jax.block_until_ready(logp)

    ref_p = jax.nn.softmax(logits.astype(jnp.float32), axis=-1)
    ref_lp = jax.nn.log_softmax(logits.astype(jnp.float32), axis=-1)
    assert probs.dtype == jnp.float32 and logp.dtype == jnp.float32
    assert jnp.allclose(probs, ref_p, atol=1e-4, rtol=1e-4)
    assert jnp.allclose(jnp.sum(probs, axis=-1), 1.0, atol=1e-3)
    assert jnp.allclose(logp, ref_lp, atol=1e-4, rtol=1e-4)

    # Opt-in approximate reciprocal (throughput path): looser tolerance only.
    probs_approx = get_normalized_probs(logits, False, approx_reciprocal=True)
    jax.block_until_ready(probs_approx)
    assert float(jnp.max(jnp.abs(probs_approx - ref_p))) < 5e-2

    # Opt-in bf16 output (cuts HBM writeback bytes for inference callers).
    probs_bf16 = get_normalized_probs(logits, False, out_dtype=jnp.bfloat16)
    jax.block_until_ready(probs_bf16)
    assert probs_bf16.dtype == jnp.bfloat16
    assert jnp.allclose(probs_bf16.astype(jnp.float32), ref_p, atol=1e-2, rtol=1e-2)

    # f32 input, larger lane-aligned vocab, ragged row grid (row_tile forced
    # below the row count so the last block is a masked boundary block).
    x2 = jax.random.normal(jax.random.PRNGKey(1), (3, 5, 384), dtype=jnp.float32)
    p2 = get_normalized_probs(x2, False, row_tile=8)
    lp2 = get_normalized_probs(x2, True)           # default single-block tile
    jax.block_until_ready(p2)
    jax.block_until_ready(lp2)
    assert jnp.allclose(p2, jax.nn.softmax(x2, axis=-1), atol=1e-4, rtol=1e-4)
    assert jnp.allclose(lp2, jax.nn.log_softmax(x2, axis=-1), atol=1e-4, rtol=1e-4)

    print("KERNEL_OK")
</pallas_src>

<mosaic_0001>
module attributes {stable_mosaic.version = 11 : i64} {
  func.func @_normalized_probs_kernel(%arg0: i32, %arg1: memref<16x128xbf16, #tpu.memory_space<vmem>>, %arg2: memref<16x128xf32, #tpu.memory_space<vmem>>) attributes {dimension_semantics = [#tpu.dimension_semantics<parallel>], iteration_bounds = array<i64: 1>, scalar_prefetch = 0 : i64, scratch_operands = 0 : i64, tpu.core_type = #tpu.core_type<tc>, window_params = [{transform_indices = @transform_0, window_bounds = array<i64: 16, 128>}, {transform_indices = @transform_1, window_bounds = array<i64: 16, 128>}]} {
    %c0 = arith.constant 0 : index
    %c0_0 = arith.constant 0 : index
    %0 = vector.load %arg1[%c0, %c0_0] : memref<16x128xbf16, #tpu.memory_space<vmem>>, vector<16x128xbf16>
    %1 = arith.extf %0 : vector<16x128xbf16> to vector<16x128xf32>
    %cst = arith.constant dense<0xFF800000> : vector<16xf32>
    %2 = vector.multi_reduction <maximumf>, %1, %cst [1] : vector<16x128xf32> to vector<16xf32>
    %3 = vector.shape_cast %2 : vector<16xf32> to vector<16x1xf32>
    %4 = vector.broadcast %3 : vector<16x1xf32> to vector<16x128xf32>
    %5 = arith.subf %1, %4 : vector<16x128xf32>
    %6 = math.exp %5 : vector<16x128xf32>
    %cst_1 = arith.constant dense<0.000000e+00> : vector<16xf32>
    %7 = vector.multi_reduction <add>, %6, %cst_1 [1] : vector<16x128xf32> to vector<16xf32>
    %8 = vector.shape_cast %7 : vector<16xf32> to vector<16x1xf32>
    %9 = tpu.reciprocal %8 : vector<16x1xf32> -> vector<16x1xf32>
    %10 = vector.broadcast %9 : vector<16x1xf32> to vector<16x128xf32>
    %11 = arith.mulf %6, %10 : vector<16x128xf32>
    %c0_2 = arith.constant 0 : index
    %c0_3 = arith.constant 0 : index
    %12 = vector.load %arg2[%c0_2, %c0_3] : memref<16x128xf32, #tpu.memory_space<vmem>>, vector<16x128xf32>
    tpu.vector_store %arg2[%c0_2, %c0_3], %11 {strides = array<i32>} : memref<16x128xf32, #tpu.memory_space<vmem>>, vector<16x128xf32>,
    return
  }
  func.func @transform_0(%arg0: i32) -> (i32, i32) {
    %c0_i32 = arith.constant 0 : i32
    %c0_i32_0 = arith.constant 0 : i32
    return %arg0, %c0_i32 : i32, i32
  }
  func.func @transform_1(%arg0: i32) -> (i32, i32) {
    %c0_i32 = arith.constant 0 : i32
    %c0_i32_0 = arith.constant 0 : i32
    return %arg0, %c0_i32 : i32, i32
  }
}

</mosaic_0001>

<llo_original>
// kernel: tpu_custom_call.1
$region0: #{tpu_custom_call.1}
  #allocation0 [shape = 'u32[]', space=smem, size = 0x4, offset = 0x4, fixed_abs, tag = 'smem constant byte address 0x4 - core index']
  #allocation1 [shape = 'u32[72,128]{1,0:T(1,128)}', space=vmem, size = 0x9000, scoped, tag = 'internal scratch']
  %s0 = inlined_call_operand.hbm [shape: bf16[16,128], index: 0, kind: input, shape index: {}]
  %s1 = inlined_call_operand.hbm [shape: f32[16,128], index: 1, kind: output, shape index: {}]
  %s2 = sld [smem:[#allocation0]]
  $region18: #{tpu_custom_call.1} parent=0
    _
  %s4 = ssub.s32 1, %s2
  %s5 = scalar_select 0, %s4, %s2
  $region1: #{tpu_custom_call.1} parent=0
    #allocation2 [shape = 'u8[4096]{0}', space=vmem, size = 0x1000, scoped, tag = 'input window, operand 0, single buffered']
    #allocation3 [shape = 's32[1]{0}', space=sflag, size = 0x4, scoped, tag = 'scoped memory for tpu_custom_call.1']
    #allocation4 [shape = 's32[1]{0}', space=sflag, size = 0x4, scoped, tag = 'scoped memory for tpu_custom_call.1']
    #allocation5 [shape = 'u8[8192]{0}', space=vmem, size = 0x2000, scoped, tag = 'output window, operand 0, single buffered']
    %6 = vsyncpa [#allocation3], 0
    %7 = vsyncpa [#allocation4], 0
    // Predicated region
    $region2: #{tpu_custom_call.1} parent=1 // pred_check
      _
    $region3: #{tpu_custom_call.1} parent=1 // pred_check_branch
      %9 = sbr.rel (0) target = $region5
    $region4: #{tpu_custom_call.1} parent=1 // pred_region
      %11 = vsyncadd [#allocation3], 0
      %s12 = sshll.u32 %s0, 4
      %s13 = int_to_ptr.hbm [resolvable:$true] %s12
      %s14 = sshll.u32 [#allocation2], 4
      %s15 = int_to_ptr.vmem [resolvable:$true] %s14
      %20 = dma.hbm_to_vmem [thread:$0]  %s13, 128, %s15, [#allocation3], 64, 64, 4
    $region5: #{tpu_custom_call.1} parent=1 // pred_fallthru
      _
    // Predicated region
    $region6: #{tpu_custom_call.1} parent=1 // pred_check
      _
    $region7: #{tpu_custom_call.1} parent=1 // pred_check_branch
      %22 = sbr.rel (0) target = $region9
    $region8: #{tpu_custom_call.1} parent=1 // pred_region
      %24 = dma.done [#allocation3], 128
    $region9: #{tpu_custom_call.1} parent=1 // pred_fallthru
      _
    %v25 = vld [vmem:[#allocation2] sm:$0xf]
    %v26 = vld [vmem:[#allocation2 + $0x4] sm:$0xf]
    %v27 = vunpack.c.l.bf16 %v25
    %v28 = vunpack.c.l.bf16 %v26
    %29 = vmax.xlane.f32.xlu0 %v27
    %v30 = vpop.xlane.xlu0 %29
    %31 = vmax.xlane.f32.xlu0 %v28
    %v32 = vpop.xlane.xlu0 %31
    %v33 = vsub.f32 %v27, %v30
    %v34 = vsub.f32 %v28, %v32
    %v35 = vmul.f32 %v33, 1.442695
    %v36 = vpow.pop %v35
    %v37 = vmul.f32 %v34, 1.442695
    %v38 = vpow.pop %v37
    %39 = vadd.xlane.f32.xlu0 %v36
    %v40 = vpop.xlane.xlu0 %39
    %41 = vadd.xlane.f32.xlu0 %v38
    %v42 = vpop.xlane.xlu0 %41
    %v43 = vrcp.pop %v40
    %v44 = vmul.f32 %v40, %v43
    %v45 = vsub.f32 1.0, %v44
    %v46 = vmul.f32 %v43, %v45
    %v47 = vadd.f32 %v43, %v46
    %vm48 = vweird.f32 %v40
    %vm49 = vweird.f32 %v43
    %vm50 = vmor %vm48, %vm49
    %v51 = vsel %vm50, %v43, %v47
    %v52 = vand.u32 2147483647, %v40
    %vm53 = vcmp.eq.f32.partialorder %v52, 8.507059e+37
    %v54 = vand.u32 %v40, 2147483648
    %v55 = vor.u32 1.1754944e-38, %v54
    %v56 = vsel %vm53, %v55, %v51
    %v57 = vrcp.pop %v42
    %v58 = vmul.f32 %v42, %v57
    %v59 = vsub.f32 1.0, %v58
    %v60 = vmul.f32 %v57, %v59
    %v61 = vadd.f32 %v57, %v60
    %vm62 = vweird.f32 %v42
    %vm63 = vweird.f32 %v57
    %vm64 = vmor %vm62, %vm63
    %v65 = vsel %vm64, %v57, %v61
    %v66 = vand.u32 2147483647, %v42
    %vm67 = vcmp.eq.f32.partialorder %v66, 8.507059e+37
    %v68 = vand.u32 %v42, 2147483648
    %v69 = vor.u32 1.1754944e-38, %v68
    %v70 = vsel %vm67, %v69, %v65
    %v71 = vmul.f32 %v36, %v56
    %v72 = vmul.f32 %v38, %v70
    %73 = vst [vmem:[#allocation5] sm:$0xff] %v71
    %74 = vst [vmem:[#allocation5 + $0x8] sm:$0xff] %v72
    // Predicated region
    $region10: #{tpu_custom_call.1} parent=1 // pred_check
      _
    $region11: #{tpu_custom_call.1} parent=1 // pred_check_branch
      %76 = sbr.rel (0) target = $region13
    $region12: #{tpu_custom_call.1} parent=1 // pred_region
      %78 = vsyncadd [#allocation4], 0
      %s79 = sshll.u32 [#allocation5], 4
      %s80 = int_to_ptr.vmem [resolvable:$true] %s79
      %s81 = sshll.u32 %s1, 4
      %s82 = int_to_ptr.hbm [resolvable:$true] %s81
      %87 = dma.vmem_to_hbm [thread:$0]  %s80, 256, %s82, [#allocation4], 128, 128, 8
    $region13: #{tpu_custom_call.1} parent=1 // pred_fallthru
      _
    // Predicated region
    $region14: #{tpu_custom_call.1} parent=1 // pred_check
      _
    $region15: #{tpu_custom_call.1} parent=1 // pred_check_branch
      %89 = sbr.rel (0) target = $region17
    $region16: #{tpu_custom_call.1} parent=1 // pred_region
      %91 = dma.done [#allocation4], 256
    $region17: #{tpu_custom_call.1} parent=1 // pred_fallthru
      _
    %92 = vsyncpa [#allocation3], 1
    %93 = vsyncpa [#allocation4], 1

</llo_original>
